<compile_context>
chip_gen: v6e
topology: v6e:2x2x1
jax: 0.10.0
libtpu: 0.0.40
codegen_flags: <defaults>
</compile_context>

<pallas_src>
import functools

import jax
import jax.numpy as jnp
from jax.experimental import pallas as pl
from jax.experimental.pallas import tpu as pltpu


def _positions_mlp_kernel(pos_ref, mask_ref, w1_ref, b1_ref, w2_ref, b2_ref,
                          out_ref, *, eps):
    # pos_ref:  (Bb, 3, N)   mask_ref: (Bb, 1, N)      -- N on the lane axis
    # w1_ref:   (1, H, 1)    b1_ref:   (1, H, 1)
    # w2_ref:   (1, H, 1)    b2_ref:   (1, 1) in SMEM (scalar)
    p = pos_ref[...]                                            # (Bb, 3, N)
    mask = mask_ref[...]                                        # (Bb, 1, N)

    # ||pos|| over the xyz (sublane) axis -> lane-dense (Bb, 1, N).
    norm = jnp.sqrt(jnp.sum(p * p, axis=1, keepdims=True))      # (Bb, 1, N)

    # Linear(1 -> H): K == 1, so this is a VPU broadcast multiply (no MXU).
    h = norm * w1_ref[...] + b1_ref[...]                        # (Bb, H, N)
    h = jnp.maximum(h, 0.0)                                     # ReLU

    # Linear(H -> 1): VPU multiply + sublane reduction (XLU slot, off the MXU).
    new_norm = jnp.sum(h * w2_ref[...], axis=1, keepdims=True)  # (Bb, 1, N)
    new_norm = new_norm + b2_ref[0, 0]                          # scalar from SMEM

    # Fused per-node scale on the lane-dense (Bb,1,N) vector: one reciprocal
    # instead of a (Bb,3,N) divide, with the mask multiply folded in.
    scale = mask * new_norm * pl.reciprocal(norm + eps, approx=False)

    new_pos = p * scale                                         # (Bb, 3, N)
    # Mean over nodes (lane axis), per batch element -- matches
    # torch.mean(new_pos, dim=1, keepdim=True) (masked nodes count as zeros).
    new_pos = new_pos - jnp.mean(new_pos, axis=2, keepdims=True)

    out_ref[...] = new_pos


def _pick_block_b(B, N, D, H, vmem_budget_bytes=8 << 20):
    """Largest divisor of B whose per-step working set fits a conservative
    VMEM budget, preferring a split that yields >= 2 grid steps (megacore)."""
    lanes = max(N, 128)                       # lane padding to 128
    # pos in + out (2*D rows), mask/norm/scale (~3 rows), hidden (H rows), f32.
    per_b_bytes = (2 * D + 3 + H) * lanes * 4
    cap = max(1, vmem_budget_bytes // per_b_bytes)
    divisors = [d for d in range(1, B + 1) if B % d == 0 and d <= cap] or [1]
    multi_step = [d for d in divisors if B // d >= 2]
    return max(multi_step) if multi_step else max(divisors)


def positions_mlp_cfirst(pos_cf, node_mask, w1, b1, w2, b2, *, eps=1e-5,
                         block_b=None):
    """Channels-first entry point.

    pos_cf: (B, 3, N) f32; node_mask: (B, N) f32.  Returns (B, 3, N) f32.
    """
    B, D, N = pos_cf.shape
    H = w1.shape[0]

    if block_b is None:
        block_b = _pick_block_b(B, N, D, H)
    assert B % block_b == 0, "block_b must divide B"
    grid_b = B // block_b

    mask_cf = node_mask.reshape(B, 1, N).astype(pos_cf.dtype)   # lane-dense
    w1r = w1.reshape(1, H, 1)            # nn.Linear(1, H).weight is (H, 1)
    b1r = b1.reshape(1, H, 1)
    w2r = w2.reshape(1, H, 1)            # nn.Linear(H, 1).weight is (1, H)
    b2r = b2.reshape(1, 1)               # scalar -> SMEM

    kernel = functools.partial(_positions_mlp_kernel, eps=eps)

    cost = pl.CostEstimate(
        flops=B * N * (4 * H + 20),
        transcendentals=2 * B * N,                  # sqrt + reciprocal
        bytes_accessed=(B * N * (D + 1 + D) + 3 * H + 2) * 4,
    )

    return pl.pallas_call(
        kernel,
        out_shape=jax.ShapeDtypeStruct((B, D, N), pos_cf.dtype),
        grid=(grid_b,),
        in_specs=[
            pl.BlockSpec((block_b, D, N), lambda b: (b, 0, 0)),   # pos
            pl.BlockSpec((block_b, 1, N), lambda b: (b, 0, 0)),   # node_mask
            pl.BlockSpec((1, H, 1), lambda b: (0, 0, 0)),         # w1
            pl.BlockSpec((1, H, 1), lambda b: (0, 0, 0)),         # b1
            pl.BlockSpec((1, H, 1), lambda b: (0, 0, 0)),         # w2
            pl.BlockSpec(memory_space=pltpu.MemorySpace.SMEM),    # b2 scalar
        ],
        out_specs=pl.BlockSpec((block_b, D, N), lambda b: (b, 0, 0)),
        compiler_params=pltpu.CompilerParams(
            dimension_semantics=("parallel",)),
        cost_estimate=cost,
    )(pos_cf, mask_cf, w1r, b1r, w2r, b2r)


def positions_mlp(pos, node_mask, w1, b1, w2, b2, *, eps=1e-5, block_b=None):
    """PyTorch-layout wrapper. pos: (B, N, 3) f32; node_mask: (B, N) f32.

    Transposes to the lane-dense (B, 3, N) layout at the HBM boundary
    (pure layout plumbing; consumers that accept (B, 3, N) should call
    positions_mlp_cfirst directly and skip the transposes).
    """
    pos_cf = jnp.transpose(pos, (0, 2, 1))                      # (B, 3, N)
    out_cf = positions_mlp_cfirst(pos_cf, node_mask, w1, b1, w2, b2,
                                  eps=eps, block_b=block_b)
    return jnp.transpose(out_cf, (0, 2, 1))                     # (B, N, 3)


def positions_mlp_ref(pos, node_mask, w1, b1, w2, b2, *, eps=1e-5):
    """Pure-JAX reference mirroring the PyTorch forward exactly."""
    norm = jnp.linalg.norm(pos, axis=-1, keepdims=True)               # (B,N,1)
    h = jnp.maximum(norm @ w1.T + b1, 0.0)                            # (B,N,H)
    new_norm = h @ w2.T + b2                                          # (B,N,1)
    new_pos = pos * new_norm / (norm + eps)
    new_pos = new_pos * node_mask[..., None]
    new_pos = new_pos - jnp.mean(new_pos, axis=1, keepdims=True)
    return new_pos


if __name__ == "__main__":
    B, N, D, H = 2, 16, 3, 32
    eps = 1e-5

    key = jax.random.PRNGKey(0)
    k_pos, k_mask, k_w1, k_b1, k_w2, k_b2 = jax.random.split(key, 6)

    pos = jax.random.normal(k_pos, (B, N, D), dtype=jnp.float32)
    node_mask = (jax.random.uniform(k_mask, (B, N)) > 0.25).astype(jnp.float32)

    # Shapes match nn.Linear(1, H) and nn.Linear(H, 1).
    w1 = jax.random.normal(k_w1, (H, 1), dtype=jnp.float32) * 0.5
    b1 = jax.random.normal(k_b1, (H,), dtype=jnp.float32) * 0.1
    w2 = jax.random.normal(k_w2, (1, H), dtype=jnp.float32) * 0.5
    b2 = jax.random.normal(k_b2, (1,), dtype=jnp.float32) * 0.1

    out = positions_mlp(pos, node_mask, w1, b1, w2, b2, eps=eps)
    out = jax.block_until_ready(out)

    ref = positions_mlp_ref(pos, node_mask, w1, b1, w2, b2, eps=eps)
    assert out.shape == (B, N, D)
    assert jnp.allclose(out, ref, atol=1e-5, rtol=1e-5), "mismatch vs reference"

    print("KERNEL_OK")
</pallas_src>

<mosaic_0001>
module attributes {stable_mosaic.version = 11 : i64} {
  func.func @_positions_mlp_kernel(%arg0: i32, %arg1: memref<1x3x16xf32, #tpu.memory_space<vmem>>, %arg2: memref<1x1x16xf32, #tpu.memory_space<vmem>>, %arg3: memref<1x32x1xf32, #tpu.memory_space<vmem>>, %arg4: memref<1x32x1xf32, #tpu.memory_space<vmem>>, %arg5: memref<1x32x1xf32, #tpu.memory_space<vmem>>, %arg6: memref<1x1xf32, #tpu.memory_space<smem>>, %arg7: memref<1x3x16xf32, #tpu.memory_space<vmem>>) attributes {dimension_semantics = [#tpu.dimension_semantics<parallel>], iteration_bounds = array<i64: 2>, scalar_prefetch = 0 : i64, scratch_operands = 0 : i64, tpu.core_type = #tpu.core_type<tc>, window_params = [{transform_indices = @transform_0, window_bounds = array<i64: 1, 3, 16>}, {transform_indices = @transform_1, window_bounds = array<i64: 1, 1, 16>}, {pipeline_mode = #tpu.pipeline_mode<synchronous>, transform_indices = @transform_2, window_bounds = array<i64: 1, 32, 1>}, {pipeline_mode = #tpu.pipeline_mode<synchronous>, transform_indices = @transform_3, window_bounds = array<i64: 1, 32, 1>}, {pipeline_mode = #tpu.pipeline_mode<synchronous>, transform_indices = @transform_4, window_bounds = array<i64: 1, 32, 1>}, {transform_indices = @transform_5, window_bounds = array<i64: 1, 1>}, {transform_indices = @transform_6, window_bounds = array<i64: 1, 3, 16>}]} {
    %c0 = arith.constant 0 : index
    %c0_0 = arith.constant 0 : index
    %c0_1 = arith.constant 0 : index
    %0 = vector.load %arg1[%c0, %c0_0, %c0_1] : memref<1x3x16xf32, #tpu.memory_space<vmem>>, vector<1x3x16xf32>
    %c0_2 = arith.constant 0 : index
    %c0_3 = arith.constant 0 : index
    %c0_4 = arith.constant 0 : index
    %1 = vector.load %arg2[%c0_2, %c0_3, %c0_4] : memref<1x1x16xf32, #tpu.memory_space<vmem>>, vector<1x1x16xf32>
    %2 = arith.mulf %0, %0 : vector<1x3x16xf32>
    %cst = arith.constant dense<0.000000e+00> : vector<1x16xf32>
    %3 = vector.multi_reduction <add>, %2, %cst [1] : vector<1x3x16xf32> to vector<1x16xf32>
    %4 = vector.shape_cast %3 : vector<1x16xf32> to vector<1x1x16xf32>
    %5 = math.sqrt %4 : vector<1x1x16xf32>
    %c0_5 = arith.constant 0 : index
    %c0_6 = arith.constant 0 : index
    %c0_7 = arith.constant 0 : index
    %6 = vector.load %arg3[%c0_5, %c0_6, %c0_7] : memref<1x32x1xf32, #tpu.memory_space<vmem>>, vector<1x32x1xf32>
    %7 = vector.broadcast %5 : vector<1x1x16xf32> to vector<1x32x16xf32>
    %8 = vector.broadcast %6 : vector<1x32x1xf32> to vector<1x32x16xf32>
    %9 = arith.mulf %7, %8 : vector<1x32x16xf32>
    %c0_8 = arith.constant 0 : index
    %c0_9 = arith.constant 0 : index
    %c0_10 = arith.constant 0 : index
    %10 = vector.load %arg4[%c0_8, %c0_9, %c0_10] : memref<1x32x1xf32, #tpu.memory_space<vmem>>, vector<1x32x1xf32>
    %11 = vector.broadcast %10 : vector<1x32x1xf32> to vector<1x32x16xf32>
    %12 = arith.addf %9, %11 : vector<1x32x16xf32>
    %cst_11 = arith.constant 0.000000e+00 : f32
    %13 = vector.broadcast %cst_11 : f32 to vector<1x32x16xf32>
    %14 = arith.maximumf %12, %13 : vector<1x32x16xf32>
    %c0_12 = arith.constant 0 : index
    %c0_13 = arith.constant 0 : index
    %c0_14 = arith.constant 0 : index
    %15 = vector.load %arg5[%c0_12, %c0_13, %c0_14] : memref<1x32x1xf32, #tpu.memory_space<vmem>>, vector<1x32x1xf32>
    %16 = vector.broadcast %15 : vector<1x32x1xf32> to vector<1x32x16xf32>
    %17 = arith.mulf %14, %16 : vector<1x32x16xf32>
    %cst_15 = arith.constant dense<0.000000e+00> : vector<1x16xf32>
    %18 = vector.multi_reduction <add>, %17, %cst_15 [1] : vector<1x32x16xf32> to vector<1x16xf32>
    %19 = vector.shape_cast %18 : vector<1x16xf32> to vector<1x1x16xf32>
    %c0_16 = arith.constant 0 : index
    %c0_17 = arith.constant 0 : index
    %20 = memref.load %arg6[%c0_16, %c0_17] : memref<1x1xf32, #tpu.memory_space<smem>>
    %21 = vector.broadcast %20 : f32 to vector<1x1x16xf32>
    %22 = arith.addf %19, %21 : vector<1x1x16xf32>
    %23 = arith.mulf %1, %22 : vector<1x1x16xf32>
    %cst_18 = arith.constant 9.99999974E-6 : f32
    %24 = vector.broadcast %cst_18 : f32 to vector<1x1x16xf32>
    %25 = arith.addf %5, %24 : vector<1x1x16xf32>
    %26 = tpu.reciprocal %25 : vector<1x1x16xf32> -> vector<1x1x16xf32>
    %27 = arith.mulf %23, %26 : vector<1x1x16xf32>
    %28 = vector.broadcast %27 : vector<1x1x16xf32> to vector<1x3x16xf32>
    %29 = arith.mulf %0, %28 : vector<1x3x16xf32>
    %cst_19 = arith.constant dense<0.000000e+00> : vector<1x3xf32>
    %30 = vector.multi_reduction <add>, %29, %cst_19 [2] : vector<1x3x16xf32> to vector<1x3xf32>
    %31 = vector.shape_cast %30 : vector<1x3xf32> to vector<1x3x1xf32>
    %cst_20 = arith.constant 1.600000e+01 : f32
    %32 = vector.broadcast %cst_20 : f32 to vector<1x3x1xf32>
    %33 = arith.divf %31, %32 : vector<1x3x1xf32>
    %34 = vector.broadcast %33 : vector<1x3x1xf32> to vector<1x3x16xf32>
    %35 = arith.subf %29, %34 : vector<1x3x16xf32>
    %c0_21 = arith.constant 0 : index
    %c0_22 = arith.constant 0 : index
    %c0_23 = arith.constant 0 : index
    %36 = vector.load %arg7[%c0_21, %c0_22, %c0_23] : memref<1x3x16xf32, #tpu.memory_space<vmem>>, vector<1x3x16xf32>
    tpu.vector_store %arg7[%c0_21, %c0_22, %c0_23], %35 {strides = array<i32>} : memref<1x3x16xf32, #tpu.memory_space<vmem>>, vector<1x3x16xf32>,
    return
  }
  func.func @transform_0(%arg0: i32) -> (i32, i32, i32) {
    %c0_i32 = arith.constant 0 : i32
    %c0_i32_0 = arith.constant 0 : i32
    %c0_i32_1 = arith.constant 0 : i32
    return %arg0, %c0_i32, %c0_i32_0 : i32, i32, i32
  }
  func.func @transform_1(%arg0: i32) -> (i32, i32, i32) {
    %c0_i32 = arith.constant 0 : i32
    %c0_i32_0 = arith.constant 0 : i32
    %c0_i32_1 = arith.constant 0 : i32
    return %arg0, %c0_i32, %c0_i32_0 : i32, i32, i32
  }
  func.func @transform_2(%arg0: i32) -> (i32, i32, i32) {
    %c0_i32 = arith.constant 0 : i32
    %c0_i32_0 = arith.constant 0 : i32
    %c0_i32_1 = arith.constant 0 : i32
    %c0_i32_2 = arith.constant 0 : i32
    return %c0_i32, %c0_i32_0, %c0_i32_1 : i32, i32, i32
  }
  func.func @transform_3(%arg0: i32) -> (i32, i32, i32) {
    %c0_i32 = arith.constant 0 : i32
    %c0_i32_0 = arith.constant 0 : i32
    %c0_i32_1 = arith.constant 0 : i32
    %c0_i32_2 = arith.constant 0 : i32
    return %c0_i32, %c0_i32_0, %c0_i32_1 : i32, i32, i32
  }
  func.func @transform_4(%arg0: i32) -> (i32, i32, i32) {
    %c0_i32 = arith.constant 0 : i32
    %c0_i32_0 = arith.constant 0 : i32
    %c0_i32_1 = arith.constant 0 : i32
    %c0_i32_2 = arith.constant 0 : i32
    return %c0_i32, %c0_i32_0, %c0_i32_1 : i32, i32, i32
  }
  func.func @transform_5(%arg0: i32) -> (i32, i32) {
    %c0_i32 = arith.constant 0 : i32
    %c0_i32_0 = arith.constant 0 : i32
    %c0_i32_1 = arith.constant 0 : i32
    return %c0_i32, %c0_i32_0 : i32, i32
  }
  func.func @transform_6(%arg0: i32) -> (i32, i32, i32) {
    %c0_i32 = arith.constant 0 : i32
    %c0_i32_0 = arith.constant 0 : i32
    %c0_i32_1 = arith.constant 0 : i32
    return %arg0, %c0_i32, %c0_i32_0 : i32, i32, i32
  }
}

</mosaic_0001>

<llo_original>
// kernel: tpu_custom_call.1
$region0: #{tpu_custom_call.1}
  #allocation0 [shape = 'u32[]', space=smem, size = 0x4, offset = 0x4, fixed_abs, tag = 'smem constant byte address 0x4 - core index']
  #allocation1 [shape = 'u32[144,128]{1,0:T(1,128)}', space=vmem, size = 0x12000, scoped, tag = 'internal scratch']
  #allocation2 [shape = 'f32[1,1]{1,0:T(1,128)S(6)}', space=smem, size = 0x200, scoped, tag = 'scoped memory for tpu_custom_call.1']
  %s0 = inlined_call_operand.vmem [shape: f32[2,3,16], index: 0, kind: input, shape index: {}]
  %s1 = inlined_call_operand.vmem [shape: f32[2,1,16], index: 1, kind: input, shape index: {}]
  %s2 = inlined_call_operand.vmem [shape: f32[1,32,1], index: 2, kind: input, shape index: {}]
  %s3 = inlined_call_operand.vmem [shape: f32[1,32,1], index: 3, kind: input, shape index: {}]
  %s4 = inlined_call_operand.vmem [shape: f32[1,32,1], index: 4, kind: input, shape index: {}]
  %s5 = inlined_call_operand.<no memory space> [shape: f32[1,1], index: 5, kind: input, shape index: {}]
  %s6 = inlined_call_operand.vmem [shape: f32[2,3,16], index: 6, kind: output, shape index: {}]
  %s7 = sld [smem:[#allocation0]]
  $region57: #{tpu_custom_call.1} parent=0
    _
  %s9 = ssub.s32 1, %s7
  %s10 = scalar_select 0, %s9, %s7
  %11 = sst [smem:[#allocation2]] %s5
  loop: start=0, step=1, limit=4
  $region2: #{tpu_custom_call.1} parent=0 // loop_pre_header
    _
  $region3: #{tpu_custom_call.1} parent=0 // loop_header
    %s13 = sphi 0, %s17
    %p14 = scmp.ge.s32.totalorder %s13, 4
    %s23 = sphi 0, %s25
    %s26 = sphi 0, %s23
    %s27 = sphi 0, %s26
    %s43 = sphi 0, %s27
    %s49 = sphi 0, %s51
    %s52 = sphi 0, %s49
    %s53 = sphi 0, %s52
    %s69 = sphi 0, %s53
    %s73 = sphi 0, %s73
    %s75 = sphi 0, %s73
    %s76 = sphi 0, %s75
    %s90 = sphi 0, %s76
    %s94 = sphi 0, %s94
    %s96 = sphi 0, %s94
    %s97 = sphi 0, %s96
    %s111 = sphi 0, %s97
    %s115 = sphi 0, %s115
    %s117 = sphi 0, %s115
    %s118 = sphi 0, %s117
    %s132 = sphi 0, %s118
    %s136 = sphi 0, %s136
    %s138 = sphi 0, %s136
    %s139 = sphi 0, %s138
    %s153 = sphi 0, %s139
    %s159 = sphi 0, %s161
    %s162 = sphi 0, %s159
    %s163 = sphi 0, %s162
    %s179 = sphi 0, %s163
  $region4: #{tpu_custom_call.1} parent=0 // loop_header_branch
    %16 = sbr.rel (%p14) target = $region8
  $region5: #{tpu_custom_call.1} parent=0 // loop_body
    %s18 = ssub.s32 %s13, 1
    %s19 = ssub.s32 %s13, 2
    %s20 = sadd.s32 %s13, 1
    %s21 = ssub.s32 %s13, %s20
    %p22 = scmp.eq.s32.totalorder %s21, 0
    %s24 = sadd.s32 %s23, 1
    %s25 = scalar_select %p22, %s23, %s24
    %p28 = pneg %p22
    %p29 = scmp.eq.s32.totalorder %s13, 1
    %p30 = por %p28, %p29
    %p31 = scmp.ne.s32.totalorder %s23, %s26
    %p32 = scmp.eq.s32.totalorder %s13, 0
    %p33 = por %p31, %p32
    %p34 = scmp.ne.s32.totalorder %s23, %s26
    %p35 = scmp.eq.s32.totalorder %s18, 1
    %p36 = por %p34, %p35
    %p37 = scmp.ne.s32.totalorder %s26, %s27
    %p38 = scmp.eq.s32.totalorder %s18, 0
    %p39 = por %p37, %p38
    %p40 = scmp.ne.s32.totalorder %s26, %s27
    %p41 = scmp.eq.s32.totalorder %s19, 1
    %p42 = por %p40, %p41
    %p44 = scmp.ne.s32.totalorder %s27, %s43
    %p45 = scmp.eq.s32.totalorder %s19, 0
    %p46 = por %p44, %p45
    %s47 = ssub.s32 %s13, %s20
    %p48 = scmp.eq.s32.totalorder %s47, 0
    %s50 = sadd.s32 %s49, 1
    %s51 = scalar_select %p48, %s49, %s50
    %p54 = pneg %p48
    %p55 = scmp.eq.s32.totalorder %s13, 1
    %p56 = por %p54, %p55
    %p57 = scmp.ne.s32.totalorder %s49, %s52
    %p58 = scmp.eq.s32.totalorder %s13, 0
    %p59 = por %p57, %p58
    %p60 = scmp.ne.s32.totalorder %s49, %s52
    %p61 = scmp.eq.s32.totalorder %s18, 1
    %p62 = por %p60, %p61
    %p63 = scmp.ne.s32.totalorder %s52, %s53
    %p64 = scmp.eq.s32.totalorder %s18, 0
    %p65 = por %p63, %p64
    %p66 = scmp.ne.s32.totalorder %s52, %s53
    %p67 = scmp.eq.s32.totalorder %s19, 1
    %p68 = por %p66, %p67
    %p70 = scmp.ne.s32.totalorder %s53, %s69
    %p71 = scmp.eq.s32.totalorder %s19, 0
    %p72 = por %p70, %p71
    %s74 = sadd.s32 %s73, 1
    %p77 = scmp.eq.s32.totalorder %s13, 1
    %p78 = scmp.ne.s32.totalorder %s73, %s75
    %p79 = scmp.eq.s32.totalorder %s13, 0
    %p80 = por %p78, %p79
    %p81 = scmp.ne.s32.totalorder %s73, %s75
    %p82 = scmp.eq.s32.totalorder %s18, 1
    %p83 = por %p81, %p82
    %p84 = scmp.ne.s32.totalorder %s75, %s76
    %p85 = scmp.eq.s32.totalorder %s18, 0
    %p86 = por %p84, %p85
    %p87 = scmp.ne.s32.totalorder %s75, %s76
    %p88 = scmp.eq.s32.totalorder %s19, 1
    %p89 = por %p87, %p88
    %p91 = scmp.ne.s32.totalorder %s76, %s90
    %p92 = scmp.eq.s32.totalorder %s19, 0
    %p93 = por %p91, %p92
    %s95 = sadd.s32 %s94, 1
    %p98 = scmp.eq.s32.totalorder %s13, 1
    %p99 = scmp.ne.s32.totalorder %s94, %s96
    %p100 = scmp.eq.s32.totalorder %s13, 0
    %p101 = por %p99, %p100
    %p102 = scmp.ne.s32.totalorder %s94, %s96
    %p103 = scmp.eq.s32.totalorder %s18, 1
    %p104 = por %p102, %p103
    %p105 = scmp.ne.s32.totalorder %s96, %s97
    %p106 = scmp.eq.s32.totalorder %s18, 0
    %p107 = por %p105, %p106
    %p108 = scmp.ne.s32.totalorder %s96, %s97
    %p109 = scmp.eq.s32.totalorder %s19, 1
    %p110 = por %p108, %p109
    %p112 = scmp.ne.s32.totalorder %s97, %s111
    %p113 = scmp.eq.s32.totalorder %s19, 0
    %p114 = por %p112, %p113
    %s116 = sadd.s32 %s115, 1
    %p119 = scmp.eq.s32.totalorder %s13, 1
    %p120 = scmp.ne.s32.totalorder %s115, %s117
    %p121 = scmp.eq.s32.totalorder %s13, 0
    %p122 = por %p120, %p121
    %p123 = scmp.ne.s32.totalorder %s115, %s117
    %p124 = scmp.eq.s32.totalorder %s18, 1
    %p125 = por %p123, %p124
    %p126 = scmp.ne.s32.totalorder %s117, %s118
    %p127 = scmp.eq.s32.totalorder %s18, 0
    %p128 = por %p126, %p127
    %p129 = scmp.ne.s32.totalorder %s117, %s118
    %p130 = scmp.eq.s32.totalorder %s19, 1
    %p131 = por %p129, %p130
    %p133 = scmp.ne.s32.totalorder %s118, %s132
    %p134 = scmp.eq.s32.totalorder %s19, 0
    %p135 = por %p133, %p134
    %s137 = sadd.s32 %s136, 1
    %p140 = scmp.eq.s32.totalorder %s13, 1
    %p141 = scmp.ne.s32.totalorder %s136, %s138
    %p142 = scmp.eq.s32.totalorder %s13, 0
    %p143 = por %p141, %p142
    %p144 = scmp.ne.s32.totalorder %s136, %s138
    %p145 = scmp.eq.s32.totalorder %s18, 1
    %p146 = por %p144, %p145
    %p147 = scmp.ne.s32.totalorder %s138, %s139
    %p148 = scmp.eq.s32.totalorder %s18, 0
    %p149 = por %p147, %p148
    %p150 = scmp.ne.s32.totalorder %s138, %s139
    %p151 = scmp.eq.s32.totalorder %s19, 1
    %p152 = por %p150, %p151
    %p154 = scmp.ne.s32.totalorder %s139, %s153
    %p155 = scmp.eq.s32.totalorder %s19, 0
    %p156 = por %p154, %p155
    %s157 = ssub.s32 %s13, %s20
    %p158 = scmp.eq.s32.totalorder %s157, 0
    %s160 = sadd.s32 %s159, 1
    %s161 = scalar_select %p158, %s159, %s160
    %p164 = pneg %p158
    %p165 = scmp.eq.s32.totalorder %s13, 1
    %p166 = por %p164, %p165
    %p167 = scmp.ne.s32.totalorder %s159, %s162
    %p168 = scmp.eq.s32.totalorder %s13, 0
    %p169 = por %p167, %p168
    %p170 = scmp.ne.s32.totalorder %s159, %s162
    %p171 = scmp.eq.s32.totalorder %s18, 1
    %p172 = por %p170, %p171
    %p173 = scmp.ne.s32.totalorder %s162, %s163
    %p174 = scmp.eq.s32.totalorder %s18, 0
    %p175 = por %p173, %p174
    %p176 = scmp.ne.s32.totalorder %s162, %s163
    %p177 = scmp.eq.s32.totalorder %s19, 1
    %p178 = por %p176, %p177
    %p180 = scmp.ne.s32.totalorder %s163, %s179
    %p181 = scmp.eq.s32.totalorder %s19, 0
    %p182 = por %p180, %p181
    %p183 = scmp.le.s32.totalorder 1, %s13
    %p184 = scmp.lt.s32.totalorder %s13, 3
    %p185 = pnand %p183, %p184
    %p186 = pneg %p185
    // Predicated region
    $region9: #{tpu_custom_call.1} parent=5 // pred_check
      _
    $region10: #{tpu_custom_call.1} parent=5 // pred_check_branch
      %188 = sbr.rel (%p185) target = $region12
    $region11: #{tpu_custom_call.1} parent=5 // pred_region
      %s189 = ssub.s32 %s13, 1
      // Predicated region
      $region13: #{tpu_custom_call.1} parent=11 // pred_check
        %p190 = pneg %p86
      $region14: #{tpu_custom_call.1} parent=11 // pred_check_branch
        %192 = sbr.rel (%p190) target = $region16
      $region15: #{tpu_custom_call.1} parent=11 // pred_region
        _
      $region16: #{tpu_custom_call.1} parent=11 // pred_fallthru
        _
      // Predicated region
      $region17: #{tpu_custom_call.1} parent=11 // pred_check
        %p193 = pneg %p107
      $region18: #{tpu_custom_call.1} parent=11 // pred_check_branch
        %195 = sbr.rel (%p193) target = $region20
      $region19: #{tpu_custom_call.1} parent=11 // pred_region
        _
      $region20: #{tpu_custom_call.1} parent=11 // pred_fallthru
        _
      // Predicated region
      $region21: #{tpu_custom_call.1} parent=11 // pred_check
        %p196 = pneg %p128
      $region22: #{tpu_custom_call.1} parent=11 // pred_check_branch
        %198 = sbr.rel (%p196) target = $region24
      $region23: #{tpu_custom_call.1} parent=11 // pred_region
        _
      $region24: #{tpu_custom_call.1} parent=11 // pred_fallthru
        _
      // Predicated region
      $region25: #{tpu_custom_call.1} parent=11 // pred_check
        %p199 = pneg %p149
      $region26: #{tpu_custom_call.1} parent=11 // pred_check_branch
        %201 = sbr.rel (%p199) target = $region28
      $region27: #{tpu_custom_call.1} parent=11 // pred_region
        _
      $region28: #{tpu_custom_call.1} parent=11 // pred_fallthru
        _
    $region12: #{tpu_custom_call.1} parent=5 // pred_fallthru
      _
    %p202 = scmp.lt.s32.totalorder %s13, 2
    // Predicated region
    $region29: #{tpu_custom_call.1} parent=5 // pred_check
      %p203 = pneg %p202
    $region30: #{tpu_custom_call.1} parent=5 // pred_check_branch
      %205 = sbr.rel (%p203) target = $region32
    $region31: #{tpu_custom_call.1} parent=5 // pred_region
      // Predicated region
      $region33: #{tpu_custom_call.1} parent=31 // pred_check
        %p206 = pneg %p33
      $region34: #{tpu_custom_call.1} parent=31 // pred_check_branch
        %208 = sbr.rel (%p206) target = $region36
      $region35: #{tpu_custom_call.1} parent=31 // pred_region
        %p209 = scmp.lt.s32.totalorder %s13, 1
        %s210 = scalar_select %p209, %s13, 1
        %s211 = smul.addr %s210, 4
        %s212 = scalar_lea.vmem %s0, %s211
      $region36: #{tpu_custom_call.1} parent=31 // pred_fallthru
        _
      // Predicated region
      $region37: #{tpu_custom_call.1} parent=31 // pred_check
        %p213 = pneg %p59
      $region38: #{tpu_custom_call.1} parent=31 // pred_check_branch
        %215 = sbr.rel (%p213) target = $region40
      $region39: #{tpu_custom_call.1} parent=31 // pred_region
        %p216 = scmp.lt.s32.totalorder %s13, 1
        %s217 = scalar_select %p216, %s13, 1
        %s218 = scalar_lea.vmem %s1, %s217
      $region40: #{tpu_custom_call.1} parent=31 // pred_fallthru
        _
    $region32: #{tpu_custom_call.1} parent=5 // pred_fallthru
      _
    %p219 = scmp.le.s32.totalorder 1, %s13
    %p220 = scmp.lt.s32.totalorder %s13, 3
    %p221 = pnand %p219, %p220
    %p222 = pneg %p221
    // Predicated region
    $region41: #{tpu_custom_call.1} parent=5 // pred_check
      _
    $region42: #{tpu_custom_call.1} parent=5 // pred_check_branch
      %224 = sbr.rel (%p221) target = $region44
    $region43: #{tpu_custom_call.1} parent=5 // pred_region
      %s225 = ssub.s32 %s13, 1
      %p226 = scmp.lt.s32.totalorder %s18, 1
      %s227 = scalar_select %p226, %s18, 1
      %s228 = smul.addr %s227, 4
      %s229 = scalar_lea.vmem %s0, %s228
      %p230 = pneg %p39
      %p231 = pneg %p36
      %p232 = scmp.lt.s32.totalorder %s18, 1
      %s233 = scalar_select %p232, %s18, 1
      %s234 = scalar_lea.vmem %s1, %s233
      %p235 = pneg %p65
      %p236 = pneg %p62
      %p237 = pneg %p86
      %p238 = pneg %p83
      %p239 = pneg %p107
      %p240 = pneg %p104
      %p241 = pneg %p128
      %p242 = pneg %p125
      %p243 = pneg %p149
      %p244 = pneg %p146
      %p245 = pneg %p175
      %p246 = pneg %p172
      %p247 = scmp.lt.s32.totalorder %s18, 1
      %s248 = scalar_select %p247, %s18, 1
      %s249 = smul.addr %s248, 4
      %s250 = scalar_lea.vmem %s6, %s249
      %p251 = scmp.lt.s32.totalorder %s18, 1
      %s252 = scalar_select %p251, %s18, 1
      %s253 = smul.addr %s252, 4
      %s254 = scalar_lea.vmem %s0, %s253
      %p255 = scmp.lt.s32.totalorder %s18, 1
      %s256 = scalar_select %p255, %s18, 1
      %s257 = scalar_lea.vmem %s1, %s256
      %p258 = scmp.lt.s32.totalorder %s18, 1
      %s259 = scalar_select %p258, %s18, 1
      %s260 = smul.addr %s259, 4
      %s261 = scalar_lea.vmem %s6, %s260
      %v262 = vld [vmem:[%s254] sm:$0x7]
      %v263 = vld [vmem:[%s257] sm:$0x1]
      %v264 = vmul.f32 %v262, %v262
      %vm265 = vcmask 124928
      %v266 = vsel %vm265, %v264, 0.0
      %v267 = vrot.slane %v266, 4
      %v268 = vadd.f32 %v266, %v267
      %v269 = vrot.slane %v268, 2
      %v270 = vadd.f32 %v268, %v269
      %v271 = vrot.slane %v270, 1
      %v272 = vadd.f32 %v270, %v271
      %v273 = vrsqrt.pop %v272
      %v274 = vmul.f32 %v272, %v273
      %vm275 = vcmp.eq.f32.partialorder %v272, inf
      %v276 = vsel %vm275, %v272, %v274
      %vm277 = vcmp.eq.f32.partialorder %v272, 0.0
      %v278 = vand.u32 %v272, 2147483648
      %v279 = vsel %vm277, %v278, %v276
      %v280 = vld [vmem:[%s2] sm:$0xff]
      %v281 = vld [vmem:[%s2 + $0x8] sm:$0xff]
      %v282 = vld [vmem:[%s2 + $0x10] sm:$0xff]
      %v283 = vld [vmem:[%s2 + $0x18] sm:$0xff]
      %285 = vset.pattern.permute.xlu0 0
      %286 = vperm.xlu0 %285, %v280
      %v287 = vpop.permute.xlu0 %286
      %290 = vset.pattern.permute.xlu0 0
      %291 = vperm.xlu0 %290, %v281
      %v292 = vpop.permute.xlu0 %291
      %295 = vset.pattern.permute.xlu0 0
      %296 = vperm.xlu0 %295, %v282
      %v297 = vpop.permute.xlu0 %296
      %300 = vset.pattern.permute.xlu0 0
      %301 = vperm.xlu0 %300, %v283
      %v302 = vpop.permute.xlu0 %301
      %v304 = vmul.f32 %v279, %v287
      %v305 = vmul.f32 %v279, %v292
      %v306 = vmul.f32 %v279, %v297
      %v307 = vmul.f32 %v279, %v302
      %v308 = vld [vmem:[%s3] sm:$0xff]
      %v309 = vld [vmem:[%s3 + $0x8] sm:$0xff]
      %v310 = vld [vmem:[%s3 + $0x10] sm:$0xff]
      %v311 = vld [vmem:[%s3 + $0x18] sm:$0xff]
      %313 = vset.pattern.permute.xlu0 0
      %314 = vperm.xlu0 %313, %v308
      %v315 = vpop.permute.xlu0 %314
      %318 = vset.pattern.permute.xlu0 0
      %319 = vperm.xlu0 %318, %v309
      %v320 = vpop.permute.xlu0 %319
      %323 = vset.pattern.permute.xlu0 0
      %324 = vperm.xlu0 %323, %v310
      %v325 = vpop.permute.xlu0 %324
      %328 = vset.pattern.permute.xlu0 0
      %329 = vperm.xlu0 %328, %v311
      %v330 = vpop.permute.xlu0 %329
      %v332 = vadd.f32 %v304, %v315
      %v333 = vadd.f32 %v305, %v320
      %v334 = vadd.f32 %v306, %v325
      %v335 = vadd.f32 %v307, %v330
      %v336 = vmax.f32 %v332, 0.0
      %v337 = vmax.f32 %v333, 0.0
      %v338 = vmax.f32 %v334, 0.0
      %v339 = vmax.f32 %v335, 0.0
      %v340 = vld [vmem:[%s4] sm:$0xff]
      %v341 = vld [vmem:[%s4 + $0x8] sm:$0xff]
      %v342 = vld [vmem:[%s4 + $0x10] sm:$0xff]
      %v343 = vld [vmem:[%s4 + $0x18] sm:$0xff]
      %345 = vset.pattern.permute.xlu0 0
      %346 = vperm.xlu0 %345, %v340
      %v347 = vpop.permute.xlu0 %346
      %350 = vset.pattern.permute.xlu0 0
      %351 = vperm.xlu0 %350, %v341
      %v352 = vpop.permute.xlu0 %351
      %355 = vset.pattern.permute.xlu0 0
      %356 = vperm.xlu0 %355, %v342
      %v357 = vpop.permute.xlu0 %356
      %360 = vset.pattern.permute.xlu0 0
      %361 = vperm.xlu0 %360, %v343
      %v362 = vpop.permute.xlu0 %361
      %v364 = vmul.f32 %v336, %v347
      %v365 = vmul.f32 %v337, %v352
      %v366 = vmul.f32 %v338, %v357
      %v367 = vmul.f32 %v339, %v362
      %vm368 = vcmask 130048
      %v369 = vsel %vm368, %v364, 0.0
      %v370 = vsel %vm368, %v365, 0.0
      %v371 = vadd.f32 %v369, %v370
      %v372 = vsel %vm368, %v366, 0.0
      %v373 = vadd.f32 %v371, %v372
      %v374 = vsel %vm368, %v367, 0.0
      %v375 = vadd.f32 %v373, %v374
      %v376 = vrot.slane %v375, 4
      %v377 = vadd.f32 %v375, %v376
      %v378 = vrot.slane %v377, 2
      %v379 = vadd.f32 %v377, %v378
      %v380 = vrot.slane %v379, 1
      %v381 = vadd.f32 %v379, %v380
      %s382 = sld [smem:[#allocation2]]
      %v383 = vstv %s382
      %v384 = vadd.f32 %v381, %v383
      %v385 = vmul.f32 %v263, %v384
      %v386 = vadd.f32 %v279, 1e-05
      %v387 = vrcp.pop %v386
      %v388 = vmul.f32 %v385, %v387
      %v390 = vlaneseq
      %v391 = vshrl.u32 %v390, 7
      %v392 = vsub.s32 0, %v391
      %v393 = vrot.slane %v388, %v392
      %v395 = vmul.f32 %v262, %v393
      %v396 = vsel %vm265, %v395, 0.0
      %397 = vadd.xlane.f32.xlu0 %v396
      %v398 = vpop.xlane.xlu0 %397
      %v399 = vrcp.pop 16.0
      %v400 = vmul.f32 %v398, %v399
      %v401 = vsub.f32 %v395, %v400
      %402 = vst.msk [vmem:[%s261] sm:$0x7] %vm265, %v401
      %p403 = scmp.lt.s32.totalorder %s18, 1
      %s404 = scalar_select %p403, %s18, 1
      %s405 = smul.addr %s404, 4
      %s406 = scalar_lea.vmem %s6, %s405
      // Predicated region
      $region45: #{tpu_custom_call.1} parent=43 // pred_check
        %p407 = pneg %p172
      $region46: #{tpu_custom_call.1} parent=43 // pred_check_branch
        %409 = sbr.rel (%p407) target = $region48
      $region47: #{tpu_custom_call.1} parent=43 // pred_region
        _
      $region48: #{tpu_custom_call.1} parent=43 // pred_fallthru
        _
    $region44: #{tpu_custom_call.1} parent=5 // pred_fallthru
      _
    %p410 = scmp.le.s32.totalorder 2, %s13
    // Predicated region
    $region49: #{tpu_custom_call.1} parent=5 // pred_check
      %p411 = pneg %p410
    $region50: #{tpu_custom_call.1} parent=5 // pred_check_branch
      %413 = sbr.rel (%p411) target = $region52
    $region51: #{tpu_custom_call.1} parent=5 // pred_region
      %s414 = ssub.s32 %s13, 2
      // Predicated region
      $region53: #{tpu_custom_call.1} parent=51 // pred_check
        %p415 = pneg %p178
      $region54: #{tpu_custom_call.1} parent=51 // pred_check_branch
        %417 = sbr.rel (%p415) target = $region56
      $region55: #{tpu_custom_call.1} parent=51 // pred_region
        %p418 = scmp.lt.s32.totalorder %s19, 1
        %s419 = scalar_select %p418, %s19, 1
        %s420 = smul.addr %s419, 4
        %s421 = scalar_lea.vmem %s6, %s420
      $region56: #{tpu_custom_call.1} parent=51 // pred_fallthru
        _
    $region52: #{tpu_custom_call.1} parent=5 // pred_fallthru
      _
  $region6: #{tpu_custom_call.1} parent=0 // loop_footer
    %s17 = sadd.s32 1, %s13
  $region7: #{tpu_custom_call.1} parent=0 // loop_footer_branch
    %12 = sbr.rel target = $region3
  $region8: #{tpu_custom_call.1} parent=0 // loop_exit
    _

</llo_original>
